<compile_context>
chip_gen: v7x
topology: tpu7x:2x2x1
jax: 0.10.0
libtpu: 0.0.40
codegen_flags: <defaults>
</compile_context>

<pallas_src>
import functools

import jax
import jax.numpy as jnp
from jax.experimental import pallas as pl
from jax.experimental.pallas import tpu as pltpu


def _round_up(v: int, m: int) -> int:
    return (v + m - 1) // m * m


def mlp_kernel(x_ref, w1_ref, b1_ref, w2_ref, b2_ref, o_ref):
    # fc1: (TB, D_in) @ (D_in, H) -> f32 accum, bias add in f32
    h = jnp.dot(x_ref[...], w1_ref[...], preferred_element_type=jnp.float32)
    h = h + b1_ref[...]
    # sigmoid on the EUP (logistic), stays in f32
    h = jax.nn.sigmoid(h)
    # fc2: (TB, H) @ (H, D_out) -> f32 accum, bias add in f32
    out = jnp.dot(h.astype(w2_ref.dtype), w2_ref[...],
                  preferred_element_type=jnp.float32)
    out = out + b2_ref[...]
    o_ref[...] = out.astype(o_ref.dtype)


@functools.partial(jax.jit, static_argnames=("tile_b", "compute_dtype"))
def mlp_forward(x, w1, b1, w2, b2, *, tile_b=512, compute_dtype=None):
    """x: (B, D_in); w1: (D_in, H); b1: (H,) or (1, H); w2: (H, D_out); b2: (D_out,) or (1, D_out)."""
    B, D_in = x.shape
    H = w1.shape[1]
    D_out = w2.shape[1]
    out_dtype = x.dtype
    cdt = compute_dtype if compute_dtype is not None else x.dtype

    # Lane-dense padding of feature dims; batch padded to a multiple of the tile.
    D_in_p = _round_up(D_in, 128)
    H_p = _round_up(H, 128)
    D_out_p = _round_up(D_out, 128)
    tile_b = max(8, min(int(tile_b), _round_up(B, 8)))
    B_p = _round_up(B, tile_b)

    x_p = jnp.zeros((B_p, D_in_p), cdt).at[:B, :D_in].set(x.astype(cdt))
    w1_p = jnp.zeros((D_in_p, H_p), cdt).at[:D_in, :H].set(w1.astype(cdt))
    w2_p = jnp.zeros((H_p, D_out_p), cdt).at[:H, :D_out].set(w2.astype(cdt))
    b1_p = jnp.zeros((1, H_p), jnp.float32).at[:, :H].set(
        b1.astype(jnp.float32).reshape(1, -1))
    b2_p = jnp.zeros((1, D_out_p), jnp.float32).at[:, :D_out].set(
        b2.astype(jnp.float32).reshape(1, -1))

    # Conservative VMEM budget (fits v7x's 64 MiB physical with headroom).
    isz = jnp.dtype(cdt).itemsize
    osz = jnp.dtype(out_dtype).itemsize
    est = (2 * tile_b * D_in_p * isz            # x, double-buffered
           + 2 * tile_b * D_out_p * osz         # out, double-buffered
           + 2 * (D_in_p * H_p + H_p * D_out_p) * isz   # resident weights (2 bufs)
           + 2 * (H_p + D_out_p) * 4 * 2        # biases
           + tile_b * H_p * 4)                  # f32 intermediate h
    vmem_limit = int(min(max(2 * est, 16 * 1024 * 1024), 48 * 1024 * 1024))

    grid = (B_p // tile_b,)
    out_p = pl.pallas_call(
        mlp_kernel,
        out_shape=jax.ShapeDtypeStruct((B_p, D_out_p), out_dtype),
        grid_spec=pltpu.PrefetchScalarGridSpec(
            num_scalar_prefetch=0,
            grid=grid,
            in_specs=[
                pl.BlockSpec((tile_b, D_in_p), lambda i: (i, 0)),   # streamed
                pl.BlockSpec((D_in_p, H_p), lambda i: (0, 0)),      # resident
                pl.BlockSpec((1, H_p), lambda i: (0, 0)),           # resident
                pl.BlockSpec((H_p, D_out_p), lambda i: (0, 0)),     # resident
                pl.BlockSpec((1, D_out_p), lambda i: (0, 0)),       # resident
            ],
            out_specs=pl.BlockSpec((tile_b, D_out_p), lambda i: (i, 0)),
        ),
        compiler_params=pltpu.CompilerParams(
            dimension_semantics=("parallel",),
            vmem_limit_bytes=vmem_limit,
        ),
    )(x_p, w1_p, b1_p, w2_p, b2_p)

    return out_p[:B, :D_out]


def init_params(key, input_dim, hidden_dim, output_dim, dtype=jnp.float32):
    """Deterministic init matching nn.Linear shapes (weights stored transposed)."""
    k1, k2, k3, k4 = jax.random.split(key, 4)
    bound1 = 1.0 / jnp.sqrt(input_dim)
    bound2 = 1.0 / jnp.sqrt(hidden_dim)
    w1 = jax.random.uniform(k1, (input_dim, hidden_dim), dtype, -bound1, bound1)
    b1 = jax.random.uniform(k2, (1, hidden_dim), dtype, -bound1, bound1)
    w2 = jax.random.uniform(k3, (hidden_dim, output_dim), dtype, -bound2, bound2)
    b2 = jax.random.uniform(k4, (1, output_dim), dtype, -bound2, bound2)
    return w1, b1, w2, b2


def _ref_mlp(x, w1, b1, w2, b2):
    h = jnp.dot(x, w1) + b1.reshape(1, -1)
    h = jax.nn.sigmoid(h)
    return jnp.dot(h, w2) + b2.reshape(1, -1)


if __name__ == "__main__":
    key = jax.random.PRNGKey(0)
    k_x, k_x2, k_p = jax.random.split(key, 3)

    batch, input_dim, hidden_dim, output_dim = 8, 16, 32, 8
    w1, b1, w2, b2 = init_params(k_p, input_dim, hidden_dim, output_dim)

    # Small run (single tile).
    x = jax.random.normal(k_x, (batch, input_dim), jnp.float32)
    out = jax.block_until_ready(mlp_forward(x, w1, b1, w2, b2))
    ref = _ref_mlp(x, w1, b1, w2, b2)
    assert out.shape == (batch, output_dim)
    assert jnp.allclose(out, ref, atol=1e-5, rtol=1e-5)

    # Larger batch exercising the multi-tile, pipelined grid path.
    big_batch = 1024
    x2 = jax.random.normal(k_x2, (big_batch, input_dim), jnp.float32)
    out2 = jax.block_until_ready(mlp_forward(x2, w1, b1, w2, b2, tile_b=256))
    ref2 = _ref_mlp(x2, w1, b1, w2, b2)
    assert out2.shape == (big_batch, output_dim)
    assert jnp.allclose(out2, ref2, atol=1e-5, rtol=1e-5)

    print("KERNEL_OK")
</pallas_src>

<mosaic_0001>
module attributes {stable_mosaic.version = 11 : i64} {
  func.func @mlp_kernel(%arg0: i32, %arg1: memref<8x128xf32, #tpu.memory_space<vmem>>, %arg2: memref<128x128xf32, #tpu.memory_space<vmem>>, %arg3: memref<1x128xf32, #tpu.memory_space<vmem>>, %arg4: memref<128x128xf32, #tpu.memory_space<vmem>>, %arg5: memref<1x128xf32, #tpu.memory_space<vmem>>, %arg6: memref<8x128xf32, #tpu.memory_space<vmem>>) attributes {dimension_semantics = [#tpu.dimension_semantics<parallel>], iteration_bounds = array<i64: 1>, scalar_prefetch = 0 : i64, scratch_operands = 0 : i64, tpu.core_type = #tpu.core_type<tc>, window_params = [{transform_indices = @transform_0, window_bounds = array<i64: 8, 128>}, {pipeline_mode = #tpu.pipeline_mode<synchronous>, transform_indices = @transform_1, window_bounds = array<i64: 128, 128>}, {pipeline_mode = #tpu.pipeline_mode<synchronous>, transform_indices = @transform_2, window_bounds = array<i64: 1, 128>}, {pipeline_mode = #tpu.pipeline_mode<synchronous>, transform_indices = @transform_3, window_bounds = array<i64: 128, 128>}, {pipeline_mode = #tpu.pipeline_mode<synchronous>, transform_indices = @transform_4, window_bounds = array<i64: 1, 128>}, {transform_indices = @transform_5, window_bounds = array<i64: 8, 128>}]} {
    %c0 = arith.constant 0 : index
    %c0_0 = arith.constant 0 : index
    %0 = vector.load %arg1[%c0, %c0_0] : memref<8x128xf32, #tpu.memory_space<vmem>>, vector<8x128xf32>
    %c0_1 = arith.constant 0 : index
    %c0_2 = arith.constant 0 : index
    %1 = vector.load %arg2[%c0_1, %c0_2] : memref<128x128xf32, #tpu.memory_space<vmem>>, vector<128x128xf32>
    %cst = arith.constant dense<0.000000e+00> : vector<8x128xf32>
    %2 = tpu.matmul %0, %1, %cst {dimension_numbers = #tpu.dot_dimension_numbers<[1], [0], [0], [1], [0, 0, 1, 1], [], []>} : vector<8x128xf32>, vector<128x128xf32>, vector<8x128xf32> -> vector<8x128xf32>
    %c0_3 = arith.constant 0 : index
    %c0_4 = arith.constant 0 : index
    %3 = vector.load %arg3[%c0_3, %c0_4] : memref<1x128xf32, #tpu.memory_space<vmem>>, vector<1x128xf32>
    %4 = vector.broadcast %3 : vector<1x128xf32> to vector<8x128xf32>
    %5 = arith.addf %2, %4 : vector<8x128xf32>
    %6 = arith.negf %5 : vector<8x128xf32>
    %7 = math.exp %6 : vector<8x128xf32>
    %cst_5 = arith.constant 1.000000e+00 : f32
    %8 = vector.broadcast %cst_5 : f32 to vector<8x128xf32>
    %9 = arith.addf %8, %7 : vector<8x128xf32>
    %10 = arith.divf %8, %9 : vector<8x128xf32>
    %c0_6 = arith.constant 0 : index
    %c0_7 = arith.constant 0 : index
    %11 = vector.load %arg4[%c0_6, %c0_7] : memref<128x128xf32, #tpu.memory_space<vmem>>, vector<128x128xf32>
    %cst_8 = arith.constant dense<0.000000e+00> : vector<8x128xf32>
    %12 = tpu.matmul %10, %11, %cst_8 {dimension_numbers = #tpu.dot_dimension_numbers<[1], [0], [0], [1], [0, 0, 1, 1], [], []>} : vector<8x128xf32>, vector<128x128xf32>, vector<8x128xf32> -> vector<8x128xf32>
    %c0_9 = arith.constant 0 : index
    %c0_10 = arith.constant 0 : index
    %13 = vector.load %arg5[%c0_9, %c0_10] : memref<1x128xf32, #tpu.memory_space<vmem>>, vector<1x128xf32>
    %14 = vector.broadcast %13 : vector<1x128xf32> to vector<8x128xf32>
    %15 = arith.addf %12, %14 : vector<8x128xf32>
    %c0_11 = arith.constant 0 : index
    %c0_12 = arith.constant 0 : index
    %16 = vector.load %arg6[%c0_11, %c0_12] : memref<8x128xf32, #tpu.memory_space<vmem>>, vector<8x128xf32>
    tpu.vector_store %arg6[%c0_11, %c0_12], %15 {strides = array<i32>} : memref<8x128xf32, #tpu.memory_space<vmem>>, vector<8x128xf32>,
    return
  }
  func.func @transform_0(%arg0: i32) -> (i32, i32) {
    %c0_i32 = arith.constant 0 : i32
    %c0_i32_0 = arith.constant 0 : i32
    return %arg0, %c0_i32 : i32, i32
  }
  func.func @transform_1(%arg0: i32) -> (i32, i32) {
    %c0_i32 = arith.constant 0 : i32
    %c0_i32_0 = arith.constant 0 : i32
    %c0_i32_1 = arith.constant 0 : i32
    return %c0_i32, %c0_i32_0 : i32, i32
  }
  func.func @transform_2(%arg0: i32) -> (i32, i32) {
    %c0_i32 = arith.constant 0 : i32
    %c0_i32_0 = arith.constant 0 : i32
    %c0_i32_1 = arith.constant 0 : i32
    return %c0_i32, %c0_i32_0 : i32, i32
  }
  func.func @transform_3(%arg0: i32) -> (i32, i32) {
    %c0_i32 = arith.constant 0 : i32
    %c0_i32_0 = arith.constant 0 : i32
    %c0_i32_1 = arith.constant 0 : i32
    return %c0_i32, %c0_i32_0 : i32, i32
  }
  func.func @transform_4(%arg0: i32) -> (i32, i32) {
    %c0_i32 = arith.constant 0 : i32
    %c0_i32_0 = arith.constant 0 : i32
    %c0_i32_1 = arith.constant 0 : i32
    return %c0_i32, %c0_i32_0 : i32, i32
  }
  func.func @transform_5(%arg0: i32) -> (i32, i32) {
    %c0_i32 = arith.constant 0 : i32
    %c0_i32_0 = arith.constant 0 : i32
    return %arg0, %c0_i32 : i32, i32
  }
}

</mosaic_0001>

<llo_original>
// kernel: mlp_forward.1
$region0: #{mlp_forward.1}
  #allocation0 [shape = 'u32[]', space=smem, size = 0x4, offset = 0x4, fixed_abs, tag = 'smem constant byte address 0x4 - core index']
  #allocation1 [shape = 'u32[144,128]{1,0:T(1,128)}', space=vmem, size = 0x12000, scoped, tag = 'internal scratch']
  %s0 = inlined_call_operand.vmem [shape: f32[8,128], index: 0, kind: input, shape index: {}]
  %s1 = inlined_call_operand.vmem [shape: f32[128,128], index: 1, kind: input, shape index: {}]
  %s2 = inlined_call_operand.vmem [shape: f32[1,128], index: 2, kind: input, shape index: {}]
  %s3 = inlined_call_operand.vmem [shape: f32[128,128], index: 3, kind: input, shape index: {}]
  %s4 = inlined_call_operand.vmem [shape: f32[1,128], index: 4, kind: input, shape index: {}]
  %s5 = inlined_call_operand.hbm [shape: f32[8,128], index: 5, kind: output, shape index: {}]
  %s6 = sld [smem:[#allocation0]]
  $region30: #{mlp_forward.1} parent=0
    _
  %s8 = ssub.s32 1, %s6
  %s9 = scalar_select 0, %s8, %s6
  $region1: #{mlp_forward.1} parent=0
    #allocation2 [shape = 'u8[4096]{0}', space=vmem, size = 0x1000, scoped, tag = 'output window, operand 0, single buffered']
    #allocation3 [shape = 's32[1]{0}', space=sflag, size = 0x4, scoped, tag = 'scoped memory for mlp_forward.1']
    %10 = vsyncpa [#allocation3], 0
    // Predicated region
    $region2: #{mlp_forward.1} parent=1 // pred_check
      _
    $region3: #{mlp_forward.1} parent=1 // pred_check_branch
      %12 = sbr.rel (0) target = $region5
    $region4: #{mlp_forward.1} parent=1 // pred_region
      _
    $region5: #{mlp_forward.1} parent=1 // pred_fallthru
      _
    // Predicated region
    $region6: #{mlp_forward.1} parent=1 // pred_check
      _
    $region7: #{mlp_forward.1} parent=1 // pred_check_branch
      %14 = sbr.rel (0) target = $region9
    $region8: #{mlp_forward.1} parent=1 // pred_region
      _
    $region9: #{mlp_forward.1} parent=1 // pred_fallthru
      _
    // Predicated region
    $region10: #{mlp_forward.1} parent=1 // pred_check
      _
    $region11: #{mlp_forward.1} parent=1 // pred_check_branch
      %16 = sbr.rel (0) target = $region13
    $region12: #{mlp_forward.1} parent=1 // pred_region
      _
    $region13: #{mlp_forward.1} parent=1 // pred_fallthru
      _
    // Predicated region
    $region14: #{mlp_forward.1} parent=1 // pred_check
      _
    $region15: #{mlp_forward.1} parent=1 // pred_check_branch
      %18 = sbr.rel (0) target = $region17
    $region16: #{mlp_forward.1} parent=1 // pred_region
      _
    $region17: #{mlp_forward.1} parent=1 // pred_fallthru
      _
    // Predicated region
    $region18: #{mlp_forward.1} parent=1 // pred_check
      _
    $region19: #{mlp_forward.1} parent=1 // pred_check_branch
      %20 = sbr.rel (0) target = $region21
    $region20: #{mlp_forward.1} parent=1 // pred_region
      _
    $region21: #{mlp_forward.1} parent=1 // pred_fallthru
      _
    %v21 = vld [vmem:[%s0] sm:$0xff]
    %v22 = vld [vmem:[%s1] sm:$0xff]
    %v23 = vld [vmem:[%s1 + $0x8] sm:$0xff]
    %v24 = vld [vmem:[%s1 + $0x10] sm:$0xff]
    %v25 = vld [vmem:[%s1 + $0x18] sm:$0xff]
    %v26 = vld [vmem:[%s1 + $0x20] sm:$0xff]
    %v27 = vld [vmem:[%s1 + $0x28] sm:$0xff]
    %v28 = vld [vmem:[%s1 + $0x30] sm:$0xff]
    %v29 = vld [vmem:[%s1 + $0x38] sm:$0xff]
    %v30 = vld [vmem:[%s1 + $0x40] sm:$0xff]
    %v31 = vld [vmem:[%s1 + $0x48] sm:$0xff]
    %v32 = vld [vmem:[%s1 + $0x50] sm:$0xff]
    %v33 = vld [vmem:[%s1 + $0x58] sm:$0xff]
    %v34 = vld [vmem:[%s1 + $0x60] sm:$0xff]
    %v35 = vld [vmem:[%s1 + $0x68] sm:$0xff]
    %v36 = vld [vmem:[%s1 + $0x70] sm:$0xff]
    %v37 = vld [vmem:[%s1 + $0x78] sm:$0xff]
    %v38 = vld [vmem:[%s2] sm:$0x1]
    %v40 = vlaneseq
    %v41 = vshrl.u32 %v40, 7
    %v42 = vsub.s32 0, %v41
    %v43 = vrot.slane %v38, %v42
    %45 = vmatprep.subr.mxu0 0.0
    %46 = vmatpush1.msra.mxu0 %v22
    %47 = vmatprep.subr.mxu0 0.0
    %48 = vmatpush1.msra.mxu0 %v23
    %49 = vmatprep.subr.mxu0 0.0
    %50 = vmatpush1.msra.mxu0 %v24
    %51 = vmatprep.subr.mxu0 0.0
    %52 = vmatpush1.msra.mxu0 %v25
    %53 = vmatprep.subr.mxu0 0.0
    %54 = vmatpush1.msra.mxu0 %v26
    %55 = vmatprep.subr.mxu0 0.0
    %56 = vmatpush1.msra.mxu0 %v27
    %57 = vmatprep.subr.mxu0 0.0
    %58 = vmatpush1.msra.mxu0 %v28
    %59 = vmatprep.subr.mxu0 0.0
    %60 = vmatpush1.msra.mxu0 %v29
    %61 = vmatprep.subr.mxu0 0.0
    %62 = vmatpush1.msra.mxu0 %v30
    %63 = vmatprep.subr.mxu0 0.0
    %64 = vmatpush1.msra.mxu0 %v31
    %65 = vmatprep.subr.mxu0 0.0
    %66 = vmatpush1.msra.mxu0 %v32
    %67 = vmatprep.subr.mxu0 0.0
    %68 = vmatpush1.msra.mxu0 %v33
    %69 = vmatprep.subr.mxu0 0.0
    %70 = vmatpush1.msra.mxu0 %v34
    %71 = vmatprep.subr.mxu0 0.0
    %72 = vmatpush1.msra.mxu0 %v35
    %73 = vmatprep.subr.mxu0 0.0
    %74 = vmatpush1.msra.mxu0 %v36
    %75 = vmatprep.subr.mxu0 0.0
    %76 = vmatpush1.msra.mxu0 %v37
    %77 = vmatprep.subr.mxu0 0.0
    %78 = vmatpush1.msra.mxu0 0.0
    %79 = vmatprep.subr.mxu0 0.0
    %80 = vmatpush1.msra.mxu0 0.0
    %81 = vmatprep.subr.mxu0 0.0
    %82 = vmatpush1.msra.mxu0 0.0
    %83 = vmatprep.subr.mxu0 0.0
    %84 = vmatpush1.msra.mxu0 0.0
    %85 = vmatprep.subr.mxu0 0.0
    %86 = vmatpush1.msra.mxu0 0.0
    %87 = vmatprep.subr.mxu0 0.0
    %88 = vmatpush1.msra.mxu0 0.0
    %89 = vmatprep.subr.mxu0 0.0
    %90 = vmatpush1.msra.mxu0 0.0
    %91 = vmatprep.subr.mxu0 0.0
    %92 = vmatpush1.msra.mxu0 0.0
    %93 = vmatprep.subr.mxu0 0.0
    %94 = vmatpush1.msra.mxu0 0.0
    %95 = vmatprep.subr.mxu0 0.0
    %96 = vmatpush1.msra.mxu0 0.0
    %97 = vmatprep.subr.mxu0 0.0
    %98 = vmatpush1.msra.mxu0 0.0
    %99 = vmatprep.subr.mxu0 0.0
    %100 = vmatpush1.msra.mxu0 0.0
    %101 = vmatprep.subr.mxu0 0.0
    %102 = vmatpush1.msra.mxu0 0.0
    %103 = vmatprep.subr.mxu0 0.0
    %104 = vmatpush1.msra.mxu0 0.0
    %105 = vmatprep.subr.mxu0 0.0
    %106 = vmatpush1.msra.mxu0 0.0
    %107 = vmatprep.subr.mxu0 0.0
    %108 = vmatpush1.msra.mxu0 0.0
    %109 = vmatprep.mubr.f32.mxu0 0.0
    %110 = vmatmul.mubr.f32.gmra.mrb[0].mxu0 %v21
    %v111 = vpop.f32.mrb[0].mxu0
    %v112 = vadd.f32 %v43, %v111
    %v113 = vpop.f32.mrb[0].mxu0
    %114 = vdwg.mxu0
    %v115 = vxor.u32 %v112, 2147483648
    %v116 = vmul.f32 %v115, 1.442695
    %v117 = vpow.pop %v116
    %v118 = vadd.f32 %v117, 1.0
    %v119 = vrcp.pop %v118
    %v120 = vmul.f32 1.0, %v119
    %v121 = vld [vmem:[%s3] sm:$0xff]
    %v122 = vld [vmem:[%s3 + $0x8] sm:$0xff]
    %v123 = vld [vmem:[%s3 + $0x10] sm:$0xff]
    %v124 = vld [vmem:[%s3 + $0x18] sm:$0xff]
    %v125 = vld [vmem:[%s3 + $0x20] sm:$0xff]
    %v126 = vld [vmem:[%s3 + $0x28] sm:$0xff]
    %v127 = vld [vmem:[%s3 + $0x30] sm:$0xff]
    %v128 = vld [vmem:[%s3 + $0x38] sm:$0xff]
    %v129 = vld [vmem:[%s3 + $0x40] sm:$0xff]
    %v130 = vld [vmem:[%s3 + $0x48] sm:$0xff]
    %v131 = vld [vmem:[%s3 + $0x50] sm:$0xff]
    %v132 = vld [vmem:[%s3 + $0x58] sm:$0xff]
    %v133 = vld [vmem:[%s3 + $0x60] sm:$0xff]
    %v134 = vld [vmem:[%s3 + $0x68] sm:$0xff]
    %v135 = vld [vmem:[%s3 + $0x70] sm:$0xff]
    %v136 = vld [vmem:[%s3 + $0x78] sm:$0xff]
    %v137 = vld [vmem:[%s4] sm:$0x1]
    %v139 = vlaneseq
    %v140 = vshrl.u32 %v139, 7
    %v141 = vsub.s32 0, %v140
    %v142 = vrot.slane %v137, %v141
    %144 = vmatprep.subr.mxu0 0.0
    %145 = vmatpush1.msra.mxu0 %v121
    %146 = vmatprep.subr.mxu0 0.0
    %147 = vmatpush1.msra.mxu0 %v122
    %148 = vmatprep.subr.mxu0 0.0
    %149 = vmatpush1.msra.mxu0 %v123
    %150 = vmatprep.subr.mxu0 0.0
    %151 = vmatpush1.msra.mxu0 %v124
    %152 = vmatprep.subr.mxu0 0.0
    %153 = vmatpush1.msra.mxu0 %v125
    %154 = vmatprep.subr.mxu0 0.0
    %155 = vmatpush1.msra.mxu0 %v126
    %156 = vmatprep.subr.mxu0 0.0
    %157 = vmatpush1.msra.mxu0 %v127
    %158 = vmatprep.subr.mxu0 0.0
    %159 = vmatpush1.msra.mxu0 %v128
    %160 = vmatprep.subr.mxu0 0.0
    %161 = vmatpush1.msra.mxu0 %v129
    %162 = vmatprep.subr.mxu0 0.0
    %163 = vmatpush1.msra.mxu0 %v130
    %164 = vmatprep.subr.mxu0 0.0
    %165 = vmatpush1.msra.mxu0 %v131
    %166 = vmatprep.subr.mxu0 0.0
    %167 = vmatpush1.msra.mxu0 %v132
    %168 = vmatprep.subr.mxu0 0.0
    %169 = vmatpush1.msra.mxu0 %v133
    %170 = vmatprep.subr.mxu0 0.0
    %171 = vmatpush1.msra.mxu0 %v134
    %172 = vmatprep.subr.mxu0 0.0
    %173 = vmatpush1.msra.mxu0 %v135
    %174 = vmatprep.subr.mxu0 0.0
    %175 = vmatpush1.msra.mxu0 %v136
    %176 = vmatprep.subr.mxu0 0.0
    %177 = vmatpush1.msra.mxu0 0.0
    %178 = vmatprep.subr.mxu0 0.0
    %179 = vmatpush1.msra.mxu0 0.0
    %180 = vmatprep.subr.mxu0 0.0
    %181 = vmatpush1.msra.mxu0 0.0
    %182 = vmatprep.subr.mxu0 0.0
    %183 = vmatpush1.msra.mxu0 0.0
    %184 = vmatprep.subr.mxu0 0.0
    %185 = vmatpush1.msra.mxu0 0.0
    %186 = vmatprep.subr.mxu0 0.0
    %187 = vmatpush1.msra.mxu0 0.0
    %188 = vmatprep.subr.mxu0 0.0
    %189 = vmatpush1.msra.mxu0 0.0
    %190 = vmatprep.subr.mxu0 0.0
    %191 = vmatpush1.msra.mxu0 0.0
    %192 = vmatprep.subr.mxu0 0.0
    %193 = vmatpush1.msra.mxu0 0.0
    %194 = vmatprep.subr.mxu0 0.0
    %195 = vmatpush1.msra.mxu0 0.0
    %196 = vmatprep.subr.mxu0 0.0
    %197 = vmatpush1.msra.mxu0 0.0
    %198 = vmatprep.subr.mxu0 0.0
    %199 = vmatpush1.msra.mxu0 0.0
    %200 = vmatprep.subr.mxu0 0.0
    %201 = vmatpush1.msra.mxu0 0.0
    %202 = vmatprep.subr.mxu0 0.0
    %203 = vmatpush1.msra.mxu0 0.0
    %204 = vmatprep.subr.mxu0 0.0
    %205 = vmatpush1.msra.mxu0 0.0
    %206 = vmatprep.subr.mxu0 0.0
    %207 = vmatpush1.msra.mxu0 0.0
    %208 = vmatprep.mubr.f32.mxu0 0.0
    %209 = vmatmul.mubr.f32.gmra.mrb[0].mxu0 %v120
    %v210 = vpop.f32.mrb[0].mxu0
    %v211 = vadd.f32 %v142, %v210
    %v212 = vpop.f32.mrb[0].mxu0
    %213 = vdwg.mxu0
    %214 = vst [vmem:[#allocation2] sm:$0xff] %v211
    // Predicated region
    $region22: #{mlp_forward.1} parent=1 // pred_check
      _
    $region23: #{mlp_forward.1} parent=1 // pred_check_branch
      %216 = sbr.rel (0) target = $region25
    $region24: #{mlp_forward.1} parent=1 // pred_region
      %s218 = ssub.s32 128, 128
      %219 = vsyncadd [#allocation3], %s218
      %s221 = sshll.u32 [#allocation2], 4
      %s222 = int_to_ptr.vmem [resolvable:$true] %s221
      %224 = dma.vmem_to_hbm [thread:$0]  %s222, 128, %s5, [#allocation3]
    $region25: #{mlp_forward.1} parent=1 // pred_fallthru
      _
    // Predicated region
    $region26: #{mlp_forward.1} parent=1 // pred_check
      _
    $region27: #{mlp_forward.1} parent=1 // pred_check_branch
      %226 = sbr.rel (0) target = $region29
    $region28: #{mlp_forward.1} parent=1 // pred_region
      %227 = dma.done [#allocation3], 128
    $region29: #{mlp_forward.1} parent=1 // pred_fallthru
      _
    %228 = vsyncpa [#allocation3], 1

</llo_original>
